<compile_context>
chip_gen: v5e
topology: v5e:2x2
jax: 0.10.0
libtpu: 0.0.40
codegen_flags: <defaults>
</compile_context>

<pallas_src>
import math

import jax
import jax.numpy as jnp
from jax.experimental import pallas as pl
from jax.experimental.pallas import tpu as pltpu


def mlp_kernel(x_ref, w0_ref, b0_ref, w1_ref, b1_ref, w2_ref, b2_ref, o_ref):
    # All operands resident in VMEM; bf16 MXU matmuls with f32 accumulation.
    y = x_ref[...]  # bf16 (tm, in_dim)

    y = jnp.dot(y, w0_ref[...], preferred_element_type=jnp.float32) + b0_ref[...]
    y = jnp.maximum(y, 0.0).astype(jnp.bfloat16)  # ReLU in f32, then cast

    y = jnp.dot(y, w1_ref[...], preferred_element_type=jnp.float32) + b1_ref[...]
    y = jnp.maximum(y, 0.0).astype(jnp.bfloat16)

    y = jnp.dot(y, w2_ref[...], preferred_element_type=jnp.float32) + b2_ref[...]
    o_ref[...] = y.astype(o_ref.dtype)


def _round_up(n, m):
    return ((n + m - 1) // m) * m


def _tpu_generation():
    """Returns (vmem_capacity_bytes, tensorcores-per-chip heuristic)."""
    vmem_cap = 128 * 1024 * 1024
    try:
        vmem_cap = int(pltpu.get_tpu_info().vmem_capacity_bytes)
    except Exception:  # non-TPU build / older runtime: assume v5e/v6e numbers
        pass
    # v7x exposes 64 MiB per TensorCore and has 2 TCs/chip; v5e/v6e: 128 MiB, 1 TC.
    num_tc = 2 if vmem_cap <= 64 * 1024 * 1024 else 1
    return vmem_cap, num_tc


def _vmem_estimate(tm, in_dim, h0p, h1p, out_dim, resident_weight_bytes):
    x_blk = 2 * tm * in_dim * 2          # double-buffered bf16 input tiles
    o_blk = 2 * tm * out_dim * 4         # double-buffered f32 output tiles
    inter = tm * (h0p + h1p) * (4 + 2)   # f32 pre-activations + bf16 casts
    acc = tm * out_dim * 4
    return resident_weight_bytes + x_blk + o_blk + inter + acc


def _pick_tm(B, in_dim, h0p, h1p, out_dim, resident_weight_bytes, vmem_budget, num_tc):
    # >=2 grid steps per TensorCore on multi-TC parts so each core still
    # pipelines (prefetch i+1 / writeback i-1); single-TC parts take the
    # largest tile that fits VMEM (each extra grid step is fixed overhead).
    min_steps = 2 * num_tc if num_tc > 1 else 1
    for cand in (512, 256, 128, 64, 32, 16, 8):  # capped at 512 to limit spill risk
        if cand > B or B % cand:
            continue
        if B // cand < min_steps:
            continue
        if _vmem_estimate(cand, in_dim, h0p, h1p, out_dim,
                          resident_weight_bytes) <= vmem_budget:
            return cand
    return B  # awkward/tiny batch: single full block (still legal)


def _resident_spec(shape):
    # Constant index_map -> the block never changes across the grid; single-buffer.
    try:
        return pl.BlockSpec(shape, lambda i: (0, 0), pipeline_mode=pl.Buffered(1))
    except TypeError:  # older jax without pipeline_mode: default double-buffering
        return pl.BlockSpec(shape, lambda i: (0, 0))


def mlp_layer_pallas(x, params, *, tm=None):
    """params = [(w0, b0), (w1, b1), (w2, b2)]; w: [in, out] (f32), b: [1, out] (f32)."""
    B, in_dim = x.shape
    (w0, b0), (w1, b1), (w2, b2) = params
    h0, h1 = w0.shape[1], w1.shape[1]
    out_dim = w2.shape[1]

    # Zero-pad hidden dims to 128 lanes: exact (zero weight cols -> zero
    # pre-activation + zero bias -> ReLU 0 -> zero rows of the next layer
    # contribute nothing), and makes the between-layer VPU work lane-dense.
    h0p = _round_up(h0, 128)
    h1p = _round_up(h1, 128)

    xb = x.astype(jnp.bfloat16)
    w0b = jnp.pad(w0.astype(jnp.bfloat16), ((0, 0), (0, h0p - h0)))
    b0f = jnp.pad(b0.astype(jnp.float32), ((0, 0), (0, h0p - h0)))
    w1b = jnp.pad(w1.astype(jnp.bfloat16), ((0, h0p - h0), (0, h1p - h1)))
    b1f = jnp.pad(b1.astype(jnp.float32), ((0, 0), (0, h1p - h1)))
    w2b = jnp.pad(w2.astype(jnp.bfloat16), ((0, h1p - h1), (0, 0)))
    b2f = b2.astype(jnp.float32)

    nbytes = lambda a: a.size * a.dtype.itemsize
    weight_ops = (w0b, b0f, w1b, b1f, w2b, b2f)
    resident_weight_bytes = sum(nbytes(a) for a in weight_ops)

    vmem_cap, num_tc = _tpu_generation()
    vmem_budget = int(0.85 * vmem_cap)  # headroom for Mosaic internal scratch/sems

    if tm is None:
        tm = _pick_tm(B, in_dim, h0p, h1p, out_dim,
                      resident_weight_bytes, vmem_budget, num_tc)
    assert B % tm == 0

    vmem_est = _vmem_estimate(tm, in_dim, h0p, h1p, out_dim, resident_weight_bytes)
    vmem_limit = int(min(max(2 * vmem_est, 8 * 1024 * 1024), vmem_budget))

    # Honest scheduler hint: unpadded FLOPs, actual operand/output bytes moved.
    cost = pl.CostEstimate(
        flops=2 * B * (in_dim * h0 + h0 * h1 + h1 * out_dim),
        transcendentals=0,
        bytes_accessed=int(nbytes(xb) + resident_weight_bytes + B * out_dim * 4),
    )

    out = pl.pallas_call(
        mlp_kernel,
        out_shape=jax.ShapeDtypeStruct((B, out_dim), x.dtype),
        grid_spec=pltpu.PrefetchScalarGridSpec(
            num_scalar_prefetch=0,
            grid=(B // tm,),
            in_specs=[
                pl.BlockSpec((tm, in_dim), lambda i: (i, 0)),
                _resident_spec(w0b.shape), _resident_spec(b0f.shape),
                _resident_spec(w1b.shape), _resident_spec(b1f.shape),
                _resident_spec(w2b.shape), _resident_spec(b2f.shape),
            ],
            out_specs=pl.BlockSpec((tm, out_dim), lambda i: (i, 0)),
        ),
        compiler_params=pltpu.CompilerParams(
            dimension_semantics=("parallel",),
            vmem_limit_bytes=vmem_limit,
        ),
        cost_estimate=cost,
    )(xb, w0b, b0f, w1b, b1f, w2b, b2f)

    return out


def init_mlp_params(key, input_dim, output_dim, L=2):
    """Deterministic init mimicking torch.nn.Linear (uniform +/- 1/sqrt(fan_in))."""
    dims = [input_dim // (2 ** l) for l in range(L + 1)] + [output_dim]
    params = []
    for l in range(L + 1):
        fan_in, fan_out = dims[l], dims[l + 1]
        key, kw, kb = jax.random.split(key, 3)
        bound = 1.0 / math.sqrt(fan_in)
        w = jax.random.uniform(kw, (fan_in, fan_out), jnp.float32, -bound, bound)
        b = jax.random.uniform(kb, (1, fan_out), jnp.float32, -bound, bound)
        params.append((w, b))
    return params


def mlp_layer_ref(x, params, L=2):
    """Reference mimicking the kernel's bf16-operand / f32-accumulate math."""
    bf = lambda a: a.astype(jnp.bfloat16).astype(jnp.float32)
    y = bf(x)
    for l in range(L):
        w, b = params[l]
        y = jnp.maximum(y @ bf(w) + b, 0.0)
        y = bf(y)
    w, b = params[L]
    return y @ bf(w) + b


if __name__ == "__main__":
    key = jax.random.PRNGKey(0)
    B, input_dim, output_dim, L = 256, 64, 8, 2

    kx, kp = jax.random.split(key)
    x = jax.random.normal(kx, (B, input_dim), jnp.float32)
    params = init_mlp_params(kp, input_dim, output_dim, L=L)

    out = mlp_layer_pallas(x, params)
    out = jax.block_until_ready(out)

    ref = mlp_layer_ref(x, params, L=L)
    assert out.shape == (B, output_dim)
    assert jnp.allclose(out, ref, atol=1e-2, rtol=1e-2)

    print("KERNEL_OK")
</pallas_src>

<mosaic_0001>
module attributes {stable_mosaic.version = 11 : i64} {
  func.func @mlp_kernel(%arg0: i32, %arg1: memref<256x64xbf16, #tpu.memory_space<vmem>>, %arg2: memref<64x128xbf16, #tpu.memory_space<vmem>>, %arg3: memref<1x128xf32, #tpu.memory_space<vmem>>, %arg4: memref<128x128xbf16, #tpu.memory_space<vmem>>, %arg5: memref<1x128xf32, #tpu.memory_space<vmem>>, %arg6: memref<128x8xbf16, #tpu.memory_space<vmem>>, %arg7: memref<1x8xf32, #tpu.memory_space<vmem>>, %arg8: memref<256x8xf32, #tpu.memory_space<vmem>>) attributes {dimension_semantics = [#tpu.dimension_semantics<parallel>], iteration_bounds = array<i64: 1>, scalar_prefetch = 0 : i64, scratch_operands = 0 : i64, tpu.core_type = #tpu.core_type<tc>, window_params = [{transform_indices = @transform_0, window_bounds = array<i64: 256, 64>}, {pipeline_mode = #tpu.pipeline_mode<synchronous>, transform_indices = @transform_1, window_bounds = array<i64: 64, 128>}, {pipeline_mode = #tpu.pipeline_mode<synchronous>, transform_indices = @transform_2, window_bounds = array<i64: 1, 128>}, {pipeline_mode = #tpu.pipeline_mode<synchronous>, transform_indices = @transform_3, window_bounds = array<i64: 128, 128>}, {pipeline_mode = #tpu.pipeline_mode<synchronous>, transform_indices = @transform_4, window_bounds = array<i64: 1, 128>}, {pipeline_mode = #tpu.pipeline_mode<synchronous>, transform_indices = @transform_5, window_bounds = array<i64: 128, 8>}, {pipeline_mode = #tpu.pipeline_mode<synchronous>, transform_indices = @transform_6, window_bounds = array<i64: 1, 8>}, {transform_indices = @transform_7, window_bounds = array<i64: 256, 8>}]} {
    %c0 = arith.constant 0 : index
    %c0_0 = arith.constant 0 : index
    %0 = vector.load %arg1[%c0, %c0_0] : memref<256x64xbf16, #tpu.memory_space<vmem>>, vector<256x64xbf16>
    %c0_1 = arith.constant 0 : index
    %c0_2 = arith.constant 0 : index
    %1 = vector.load %arg2[%c0_1, %c0_2] : memref<64x128xbf16, #tpu.memory_space<vmem>>, vector<64x128xbf16>
    %cst = arith.constant dense<0.000000e+00> : vector<256x128xf32>
    %2 = tpu.matmul %0, %1, %cst {dimension_numbers = #tpu.dot_dimension_numbers<[1], [0], [0], [1], [0, 0, 1, 1], [], []>} : vector<256x64xbf16>, vector<64x128xbf16>, vector<256x128xf32> -> vector<256x128xf32>
    %c0_3 = arith.constant 0 : index
    %c0_4 = arith.constant 0 : index
    %3 = vector.load %arg3[%c0_3, %c0_4] : memref<1x128xf32, #tpu.memory_space<vmem>>, vector<1x128xf32>
    %4 = vector.broadcast %3 : vector<1x128xf32> to vector<256x128xf32>
    %5 = arith.addf %2, %4 : vector<256x128xf32>
    %cst_5 = arith.constant 0.000000e+00 : f32
    %6 = vector.broadcast %cst_5 : f32 to vector<256x128xf32>
    %7 = arith.maximumf %5, %6 : vector<256x128xf32>
    %8 = arith.truncf %7 : vector<256x128xf32> to vector<256x128xbf16>
    %c0_6 = arith.constant 0 : index
    %c0_7 = arith.constant 0 : index
    %9 = vector.load %arg4[%c0_6, %c0_7] : memref<128x128xbf16, #tpu.memory_space<vmem>>, vector<128x128xbf16>
    %cst_8 = arith.constant dense<0.000000e+00> : vector<256x128xf32>
    %10 = tpu.matmul %8, %9, %cst_8 {dimension_numbers = #tpu.dot_dimension_numbers<[1], [0], [0], [1], [0, 0, 1, 1], [], []>} : vector<256x128xbf16>, vector<128x128xbf16>, vector<256x128xf32> -> vector<256x128xf32>
    %c0_9 = arith.constant 0 : index
    %c0_10 = arith.constant 0 : index
    %11 = vector.load %arg5[%c0_9, %c0_10] : memref<1x128xf32, #tpu.memory_space<vmem>>, vector<1x128xf32>
    %12 = vector.broadcast %11 : vector<1x128xf32> to vector<256x128xf32>
    %13 = arith.addf %10, %12 : vector<256x128xf32>
    %cst_11 = arith.constant 0.000000e+00 : f32
    %14 = vector.broadcast %cst_11 : f32 to vector<256x128xf32>
    %15 = arith.maximumf %13, %14 : vector<256x128xf32>
    %16 = arith.truncf %15 : vector<256x128xf32> to vector<256x128xbf16>
    %c0_12 = arith.constant 0 : index
    %c0_13 = arith.constant 0 : index
    %17 = vector.load %arg6[%c0_12, %c0_13] : memref<128x8xbf16, #tpu.memory_space<vmem>>, vector<128x8xbf16>
    %cst_14 = arith.constant dense<0.000000e+00> : vector<256x8xf32>
    %18 = tpu.matmul %16, %17, %cst_14 {dimension_numbers = #tpu.dot_dimension_numbers<[1], [0], [0], [1], [0, 0, 1, 1], [], []>} : vector<256x128xbf16>, vector<128x8xbf16>, vector<256x8xf32> -> vector<256x8xf32>
    %c0_15 = arith.constant 0 : index
    %c0_16 = arith.constant 0 : index
    %19 = vector.load %arg7[%c0_15, %c0_16] : memref<1x8xf32, #tpu.memory_space<vmem>>, vector<1x8xf32>
    %20 = vector.broadcast %19 : vector<1x8xf32> to vector<256x8xf32>
    %21 = arith.addf %18, %20 : vector<256x8xf32>
    %c0_17 = arith.constant 0 : index
    %c0_18 = arith.constant 0 : index
    %22 = vector.load %arg8[%c0_17, %c0_18] : memref<256x8xf32, #tpu.memory_space<vmem>>, vector<256x8xf32>
    tpu.vector_store %arg8[%c0_17, %c0_18], %21 {strides = array<i32>} : memref<256x8xf32, #tpu.memory_space<vmem>>, vector<256x8xf32>,
    return
  }
  func.func @transform_0(%arg0: i32) -> (i32, i32) {
    %c0_i32 = arith.constant 0 : i32
    %c0_i32_0 = arith.constant 0 : i32
    return %arg0, %c0_i32 : i32, i32
  }
  func.func @transform_1(%arg0: i32) -> (i32, i32) {
    %c0_i32 = arith.constant 0 : i32
    %c0_i32_0 = arith.constant 0 : i32
    %c0_i32_1 = arith.constant 0 : i32
    return %c0_i32, %c0_i32_0 : i32, i32
  }
  func.func @transform_2(%arg0: i32) -> (i32, i32) {
    %c0_i32 = arith.constant 0 : i32
    %c0_i32_0 = arith.constant 0 : i32
    %c0_i32_1 = arith.constant 0 : i32
    return %c0_i32, %c0_i32_0 : i32, i32
  }
  func.func @transform_3(%arg0: i32) -> (i32, i32) {
    %c0_i32 = arith.constant 0 : i32
    %c0_i32_0 = arith.constant 0 : i32
    %c0_i32_1 = arith.constant 0 : i32
    return %c0_i32, %c0_i32_0 : i32, i32
  }
  func.func @transform_4(%arg0: i32) -> (i32, i32) {
    %c0_i32 = arith.constant 0 : i32
    %c0_i32_0 = arith.constant 0 : i32
    %c0_i32_1 = arith.constant 0 : i32
    return %c0_i32, %c0_i32_0 : i32, i32
  }
  func.func @transform_5(%arg0: i32) -> (i32, i32) {
    %c0_i32 = arith.constant 0 : i32
    %c0_i32_0 = arith.constant 0 : i32
    %c0_i32_1 = arith.constant 0 : i32
    return %c0_i32, %c0_i32_0 : i32, i32
  }
  func.func @transform_6(%arg0: i32) -> (i32, i32) {
    %c0_i32 = arith.constant 0 : i32
    %c0_i32_0 = arith.constant 0 : i32
    %c0_i32_1 = arith.constant 0 : i32
    return %c0_i32, %c0_i32_0 : i32, i32
  }
  func.func @transform_7(%arg0: i32) -> (i32, i32) {
    %c0_i32 = arith.constant 0 : i32
    %c0_i32_0 = arith.constant 0 : i32
    return %arg0, %c0_i32 : i32, i32
  }
}

</mosaic_0001>

<llo_original>
// kernel: tpu_custom_call.1
$region0: #{tpu_custom_call.1}
  #allocation0 [shape = 'u32[]', space=smem, size = 0x4, offset = 0x4, fixed_abs, tag = 'smem constant byte address 0x4 - core index']
  #allocation1 [shape = 'u32[72,128]{1,0:T(1,128)}', space=vmem, size = 0x9000, scoped, tag = 'internal scratch']
  %s0 = inlined_call_operand.vmem [shape: bf16[256,64], index: 0, kind: input, shape index: {}]
  %s1 = inlined_call_operand.vmem [shape: bf16[64,128], index: 1, kind: input, shape index: {}]
  %s2 = inlined_call_operand.vmem [shape: f32[1,128], index: 2, kind: input, shape index: {}]
  %s3 = inlined_call_operand.vmem [shape: bf16[128,128], index: 3, kind: input, shape index: {}]
  %s4 = inlined_call_operand.vmem [shape: f32[1,128], index: 4, kind: input, shape index: {}]
  %s5 = inlined_call_operand.vmem [shape: bf16[128,8], index: 5, kind: input, shape index: {}]
  %s6 = inlined_call_operand.vmem [shape: f32[1,8], index: 6, kind: input, shape index: {}]
  %s7 = inlined_call_operand.vmem [shape: f32[256,8], index: 7, kind: output, shape index: {}]
  %s8 = sld [smem:[#allocation0]]
  $region38: #{tpu_custom_call.1} parent=0
    _
  %s10 = ssub.s32 1, %s8
  %s11 = scalar_select 0, %s10, %s8
  // Predicated region
  $region2: #{tpu_custom_call.1} parent=0 // pred_check
    _
  $region3: #{tpu_custom_call.1} parent=0 // pred_check_branch
    %13 = sbr.rel (0) target = $region5
  $region4: #{tpu_custom_call.1} parent=0 // pred_region
    _
  $region5: #{tpu_custom_call.1} parent=0 // pred_fallthru
    _
  // Predicated region
  $region6: #{tpu_custom_call.1} parent=0 // pred_check
    _
  $region7: #{tpu_custom_call.1} parent=0 // pred_check_branch
    %15 = sbr.rel (0) target = $region9
  $region8: #{tpu_custom_call.1} parent=0 // pred_region
    _
  $region9: #{tpu_custom_call.1} parent=0 // pred_fallthru
    _
  // Predicated region
  $region10: #{tpu_custom_call.1} parent=0 // pred_check
    _
  $region11: #{tpu_custom_call.1} parent=0 // pred_check_branch
    %17 = sbr.rel (0) target = $region13
  $region12: #{tpu_custom_call.1} parent=0 // pred_region
    _
  $region13: #{tpu_custom_call.1} parent=0 // pred_fallthru
    _
  // Predicated region
  $region14: #{tpu_custom_call.1} parent=0 // pred_check
    _
  $region15: #{tpu_custom_call.1} parent=0 // pred_check_branch
    %19 = sbr.rel (0) target = $region17
  $region16: #{tpu_custom_call.1} parent=0 // pred_region
    _
  $region17: #{tpu_custom_call.1} parent=0 // pred_fallthru
    _
  // Predicated region
  $region18: #{tpu_custom_call.1} parent=0 // pred_check
    _
  $region19: #{tpu_custom_call.1} parent=0 // pred_check_branch
    %21 = sbr.rel (0) target = $region21
  $region20: #{tpu_custom_call.1} parent=0 // pred_region
    _
  $region21: #{tpu_custom_call.1} parent=0 // pred_fallthru
    _
  // Predicated region
  $region22: #{tpu_custom_call.1} parent=0 // pred_check
    _
  $region23: #{tpu_custom_call.1} parent=0 // pred_check_branch
    %23 = sbr.rel (0) target = $region25
  $region24: #{tpu_custom_call.1} parent=0 // pred_region
    _
  $region25: #{tpu_custom_call.1} parent=0 // pred_fallthru
    _
  // Predicated region
  $region26: #{tpu_custom_call.1} parent=0 // pred_check
    _
  $region27: #{tpu_custom_call.1} parent=0 // pred_check_branch
    %25 = sbr.rel (0) target = $region29
  $region28: #{tpu_custom_call.1} parent=0 // pred_region
    _
  $region29: #{tpu_custom_call.1} parent=0 // pred_fallthru
    _
  %v27 = vld [vmem:[%s0] sm:$0xf]
  %v28 = vld [vmem:[%s0 + $0x4] sm:$0xf]
  %v29 = vld [vmem:[%s0 + $0x8] sm:$0xf]
  %v30 = vld [vmem:[%s0 + $0xc] sm:$0xf]
  %v31 = vld [vmem:[%s0 + $0x10] sm:$0xf]
  %v32 = vld [vmem:[%s0 + $0x14] sm:$0xf]
  %v33 = vld [vmem:[%s0 + $0x18] sm:$0xf]
  %v34 = vld [vmem:[%s0 + $0x1c] sm:$0xf]
  %v35 = vld [vmem:[%s0 + $0x20] sm:$0xf]
  %v36 = vld [vmem:[%s0 + $0x24] sm:$0xf]
  %v37 = vld [vmem:[%s0 + $0x28] sm:$0xf]
  %v38 = vld [vmem:[%s0 + $0x2c] sm:$0xf]
  %v39 = vld [vmem:[%s0 + $0x30] sm:$0xf]
  %v40 = vld [vmem:[%s0 + $0x34] sm:$0xf]
  %v41 = vld [vmem:[%s0 + $0x38] sm:$0xf]
  %v42 = vld [vmem:[%s0 + $0x3c] sm:$0xf]
  %v43 = vld [vmem:[%s0 + $0x40] sm:$0xf]
  %v44 = vld [vmem:[%s0 + $0x44] sm:$0xf]
  %v45 = vld [vmem:[%s0 + $0x48] sm:$0xf]
  %v46 = vld [vmem:[%s0 + $0x4c] sm:$0xf]
  %v47 = vld [vmem:[%s0 + $0x50] sm:$0xf]
  %v48 = vld [vmem:[%s0 + $0x54] sm:$0xf]
  %v49 = vld [vmem:[%s0 + $0x58] sm:$0xf]
  %v50 = vld [vmem:[%s0 + $0x5c] sm:$0xf]
  %v51 = vld [vmem:[%s0 + $0x60] sm:$0xf]
  %v52 = vld [vmem:[%s0 + $0x64] sm:$0xf]
  %v53 = vld [vmem:[%s0 + $0x68] sm:$0xf]
  %v54 = vld [vmem:[%s0 + $0x6c] sm:$0xf]
  %v55 = vld [vmem:[%s0 + $0x70] sm:$0xf]
  %v56 = vld [vmem:[%s0 + $0x74] sm:$0xf]
  %v57 = vld [vmem:[%s0 + $0x78] sm:$0xf]
  %v58 = vld [vmem:[%s0 + $0x7c] sm:$0xf]
  %v59 = vld [vmem:[%s1] sm:$0xf]
  %v60 = vld [vmem:[%s1 + $0x4] sm:$0xf]
  %v61 = vld [vmem:[%s1 + $0x8] sm:$0xf]
  %v62 = vld [vmem:[%s1 + $0xc] sm:$0xf]
  %v63 = vld [vmem:[%s1 + $0x10] sm:$0xf]
  %v64 = vld [vmem:[%s1 + $0x14] sm:$0xf]
  %v65 = vld [vmem:[%s1 + $0x18] sm:$0xf]
  %v66 = vld [vmem:[%s1 + $0x1c] sm:$0xf]
  %v67 = vld [vmem:[%s2] sm:$0x1]
  %v69 = vperm.slane %v67, 0
  %v103 = vunpack.c.l.b16 %v27
  %v104 = vunpack.c.l.b16 %v28
  %v105 = vunpack.c.l.b16 %v29
  %v106 = vunpack.c.l.b16 %v30
  %v107 = vunpack.c.l.b16 %v31
  %v108 = vunpack.c.l.b16 %v32
  %v109 = vunpack.c.l.b16 %v33
  %v110 = vunpack.c.l.b16 %v34
  %v111 = vunpack.c.l.b16 %v35
  %v112 = vunpack.c.l.b16 %v36
  %v113 = vunpack.c.l.b16 %v37
  %v114 = vunpack.c.l.b16 %v38
  %v115 = vunpack.c.l.b16 %v39
  %v116 = vunpack.c.l.b16 %v40
  %v117 = vunpack.c.l.b16 %v41
  %v118 = vunpack.c.l.b16 %v42
  %v119 = vunpack.c.l.b16 %v43
  %v120 = vunpack.c.l.b16 %v44
  %v121 = vunpack.c.l.b16 %v45
  %v122 = vunpack.c.l.b16 %v46
  %v123 = vunpack.c.l.b16 %v47
  %v124 = vunpack.c.l.b16 %v48
  %v125 = vunpack.c.l.b16 %v49
  %v126 = vunpack.c.l.b16 %v50
  %v127 = vunpack.c.l.b16 %v51
  %v128 = vunpack.c.l.b16 %v52
  %v129 = vunpack.c.l.b16 %v53
  %v130 = vunpack.c.l.b16 %v54
  %v131 = vunpack.c.l.b16 %v55
  %v132 = vunpack.c.l.b16 %v56
  %v133 = vunpack.c.l.b16 %v57
  %v134 = vunpack.c.l.b16 %v58
  %v135 = vpack.c.b16 %v104, %v103
  %v136 = vpack.c.b16 %v106, %v105
  %v137 = vpack.c.b16 %v108, %v107
  %v138 = vpack.c.b16 %v110, %v109
  %v139 = vpack.c.b16 %v112, %v111
  %v140 = vpack.c.b16 %v114, %v113
  %v141 = vpack.c.b16 %v116, %v115
  %v142 = vpack.c.b16 %v118, %v117
  %v143 = vpack.c.b16 %v120, %v119
  %v144 = vpack.c.b16 %v122, %v121
  %v145 = vpack.c.b16 %v124, %v123
  %v146 = vpack.c.b16 %v126, %v125
  %v147 = vpack.c.b16 %v128, %v127
  %v148 = vpack.c.b16 %v130, %v129
  %v149 = vpack.c.b16 %v132, %v131
  %v150 = vpack.c.b16 %v134, %v133
  %v159 = vunpack.c.l.b16 %v59
  %v160 = vunpack.c.l.b16 %v60
  %v161 = vunpack.c.l.b16 %v61
  %v162 = vunpack.c.l.b16 %v62
  %v163 = vunpack.c.l.b16 %v63
  %v164 = vunpack.c.l.b16 %v64
  %v165 = vunpack.c.l.b16 %v65
  %v166 = vunpack.c.l.b16 %v66
  %v167 = vpack.c.b16 %v160, %v159
  %v168 = vpack.c.b16 %v162, %v161
  %v169 = vpack.c.b16 %v164, %v163
  %v170 = vpack.c.b16 %v166, %v165
  %vm175 = vcmask 523264
  %v177 = vsel %vm175, %v135, 0
  %v180 = vsel %vm175, %v136, 0
  %v183 = vsel %vm175, %v137, 0
  %v186 = vsel %vm175, %v138, 0
  %v189 = vsel %vm175, %v139, 0
  %v192 = vsel %vm175, %v140, 0
  %v195 = vsel %vm175, %v141, 0
  %v198 = vsel %vm175, %v142, 0
  %v201 = vsel %vm175, %v143, 0
  %v204 = vsel %vm175, %v144, 0
  %v207 = vsel %vm175, %v145, 0
  %v210 = vsel %vm175, %v146, 0
  %v213 = vsel %vm175, %v147, 0
  %v216 = vsel %vm175, %v148, 0
  %v219 = vsel %vm175, %v149, 0
  %v222 = vsel %vm175, %v150, 0
  %224 = vmatpush.bf16.msra.mxu0 0
  %225 = vmatpush.bf16.msra.mxu0 0
  %226 = vmatpush.bf16.msra.mxu0 0
  %227 = vmatpush.bf16.msra.mxu0 0
  %228 = vmatpush.bf16.msra.mxu0 %v170
  %229 = vmatpush.bf16.msra.mxu0 %v169
  %230 = vmatpush.bf16.msra.mxu0 %v168
  %231 = vmatpush.bf16.msra.mxu0 %v167
  %232 = vmatmul.bf16.gmra.mxu0 %v177
  %v233 = vpop.f32.mrf.mxu0
  %v234 = vadd.f32 %v69, %v233
  %v235 = vpop.f32.mrf.mxu0
  %v236 = vadd.f32 %v69, %v235
  %237 = vmatmul.bf16.gmra.mxu0 %v180
  %v238 = vpop.f32.mrf.mxu0
  %v239 = vadd.f32 %v69, %v238
  %v240 = vpop.f32.mrf.mxu0
  %v241 = vadd.f32 %v69, %v240
  %242 = vmatmul.bf16.gmra.mxu0 %v183
  %v243 = vpop.f32.mrf.mxu0
  %v244 = vadd.f32 %v69, %v243
  %v245 = vpop.f32.mrf.mxu0
  %v246 = vadd.f32 %v69, %v245
  %247 = vmatmul.bf16.gmra.mxu0 %v186
  %v248 = vpop.f32.mrf.mxu0
  %v249 = vadd.f32 %v69, %v248
  %v250 = vpop.f32.mrf.mxu0
  %v251 = vadd.f32 %v69, %v250
  %252 = vmatmul.bf16.gmra.mxu0 %v189
  %v253 = vpop.f32.mrf.mxu0
  %v254 = vadd.f32 %v69, %v253
  %v255 = vpop.f32.mrf.mxu0
  %v256 = vadd.f32 %v69, %v255
  %257 = vmatmul.bf16.gmra.mxu0 %v192
  %v258 = vpop.f32.mrf.mxu0
  %v259 = vadd.f32 %v69, %v258
  %v260 = vpop.f32.mrf.mxu0
  %v261 = vadd.f32 %v69, %v260
  %262 = vmatmul.bf16.gmra.mxu0 %v195
  %v263 = vpop.f32.mrf.mxu0
  %v264 = vadd.f32 %v69, %v263
  %v265 = vpop.f32.mrf.mxu0
  %v266 = vadd.f32 %v69, %v265
  %267 = vmatmul.bf16.gmra.mxu0 %v198
  %v268 = vpop.f32.mrf.mxu0
  %v269 = vadd.f32 %v69, %v268
  %v270 = vpop.f32.mrf.mxu0
  %v271 = vadd.f32 %v69, %v270
  %272 = vmatmul.bf16.gmra.mxu0 %v201
  %v273 = vpop.f32.mrf.mxu0
  %v274 = vadd.f32 %v69, %v273
  %v275 = vpop.f32.mrf.mxu0
  %v276 = vadd.f32 %v69, %v275
  %277 = vmatmul.bf16.gmra.mxu0 %v204
  %v278 = vpop.f32.mrf.mxu0
  %v279 = vadd.f32 %v69, %v278
  %v280 = vpop.f32.mrf.mxu0
  %v281 = vadd.f32 %v69, %v280
  %282 = vmatmul.bf16.gmra.mxu0 %v207
  %v283 = vpop.f32.mrf.mxu0
  %v284 = vadd.f32 %v69, %v283
  %v285 = vpop.f32.mrf.mxu0
  %v286 = vadd.f32 %v69, %v285
  %287 = vmatmul.bf16.gmra.mxu0 %v210
  %v288 = vpop.f32.mrf.mxu0
  %v289 = vadd.f32 %v69, %v288
  %v290 = vpop.f32.mrf.mxu0
  %v291 = vadd.f32 %v69, %v290
  %292 = vmatmul.bf16.gmra.mxu0 %v213
  %v293 = vpop.f32.mrf.mxu0
  %v294 = vadd.f32 %v69, %v293
  %v295 = vpop.f32.mrf.mxu0
  %v296 = vadd.f32 %v69, %v295
  %297 = vmatmul.bf16.gmra.mxu0 %v216
  %v298 = vpop.f32.mrf.mxu0
  %v299 = vadd.f32 %v69, %v298
  %v300 = vpop.f32.mrf.mxu0
  %v301 = vadd.f32 %v69, %v300
  %302 = vmatmul.bf16.gmra.mxu0 %v219
  %v303 = vpop.f32.mrf.mxu0
  %v304 = vadd.f32 %v69, %v303
  %v305 = vpop.f32.mrf.mxu0
  %v306 = vadd.f32 %v69, %v305
  %307 = vmatmul.bf16.gmra.mxu0 %v222
  %v308 = vpop.f32.mrf.mxu0
  %v309 = vadd.f32 %v69, %v308
  %v310 = vpop.f32.mrf.mxu0
  %v311 = vadd.f32 %v69, %v310
  %312 = vdwg.mxu0
  %v313 = vmax.f32 %v234, 0.0
  %v314 = vmax.f32 %v236, 0.0
  %v315 = vmax.f32 %v239, 0.0
  %v316 = vmax.f32 %v241, 0.0
  %v317 = vmax.f32 %v244, 0.0
  %v318 = vmax.f32 %v246, 0.0
  %v319 = vmax.f32 %v249, 0.0
  %v320 = vmax.f32 %v251, 0.0
  %v321 = vmax.f32 %v254, 0.0
  %v322 = vmax.f32 %v256, 0.0
  %v323 = vmax.f32 %v259, 0.0
  %v324 = vmax.f32 %v261, 0.0
  %v325 = vmax.f32 %v264, 0.0
  %v326 = vmax.f32 %v266, 0.0
  %v327 = vmax.f32 %v269, 0.0
  %v328 = vmax.f32 %v271, 0.0
  %v329 = vmax.f32 %v274, 0.0
  %v330 = vmax.f32 %v276, 0.0
  %v331 = vmax.f32 %v279, 0.0
  %v332 = vmax.f32 %v281, 0.0
  %v333 = vmax.f32 %v284, 0.0
  %v334 = vmax.f32 %v286, 0.0
  %v335 = vmax.f32 %v289, 0.0
  %v336 = vmax.f32 %v291, 0.0
  %v337 = vmax.f32 %v294, 0.0
  %v338 = vmax.f32 %v296, 0.0
  %v339 = vmax.f32 %v299, 0.0
  %v340 = vmax.f32 %v301, 0.0
  %v341 = vmax.f32 %v304, 0.0
  %v342 = vmax.f32 %v306, 0.0
  %v343 = vmax.f32 %v309, 0.0
  %v344 = vmax.f32 %v311, 0.0
  %v345 = vpack.c.bf16 %v314, %v313
  %v346 = vpack.c.bf16 %v316, %v315
  %v347 = vpack.c.bf16 %v318, %v317
  %v348 = vpack.c.bf16 %v320, %v319
  %v349 = vpack.c.bf16 %v322, %v321
  %v350 = vpack.c.bf16 %v324, %v323
  %v351 = vpack.c.bf16 %v326, %v325
  %v352 = vpack.c.bf16 %v328, %v327
  %v353 = vpack.c.bf16 %v330, %v329
  %v354 = vpack.c.bf16 %v332, %v331
  %v355 = vpack.c.bf16 %v334, %v333
  %v356 = vpack.c.bf16 %v336, %v335
  %v357 = vpack.c.bf16 %v338, %v337
  %v358 = vpack.c.bf16 %v340, %v339
  %v359 = vpack.c.bf16 %v342, %v341
  %v360 = vpack.c.bf16 %v344, %v343
  %v361 = vld [vmem:[%s3] sm:$0xf]
  %v362 = vld [vmem:[%s3 + $0x4] sm:$0xf]
  %v363 = vld [vmem:[%s3 + $0x8] sm:$0xf]
  %v364 = vld [vmem:[%s3 + $0xc] sm:$0xf]
  %v365 = vld [vmem:[%s3 + $0x10] sm:$0xf]
  %v366 = vld [vmem:[%s3 + $0x14] sm:$0xf]
  %v367 = vld [vmem:[%s3 + $0x18] sm:$0xf]
  %v368 = vld [vmem:[%s3 + $0x1c] sm:$0xf]
  %v369 = vld [vmem:[%s3 + $0x20] sm:$0xf]
  %v370 = vld [vmem:[%s3 + $0x24] sm:$0xf]
  %v371 = vld [vmem:[%s3 + $0x28] sm:$0xf]
  %v372 = vld [vmem:[%s3 + $0x2c] sm:$0xf]
  %v373 = vld [vmem:[%s3 + $0x30] sm:$0xf]
  %v374 = vld [vmem:[%s3 + $0x34] sm:$0xf]
  %v375 = vld [vmem:[%s3 + $0x38] sm:$0xf]
  %v376 = vld [vmem:[%s3 + $0x3c] sm:$0xf]
  %v377 = vld [vmem:[%s4] sm:$0x1]
  %v379 = vperm.slane %v377, 0
  %v397 = vunpack.c.l.b16 %v361
  %v398 = vunpack.c.l.b16 %v362
  %v399 = vunpack.c.l.b16 %v363
  %v400 = vunpack.c.l.b16 %v364
  %v401 = vunpack.c.l.b16 %v365
  %v402 = vunpack.c.l.b16 %v366
  %v403 = vunpack.c.l.b16 %v367
  %v404 = vunpack.c.l.b16 %v368
  %v405 = vunpack.c.l.b16 %v369
  %v406 = vunpack.c.l.b16 %v370
  %v407 = vunpack.c.l.b16 %v371
  %v408 = vunpack.c.l.b16 %v372
  %v409 = vunpack.c.l.b16 %v373
  %v410 = vunpack.c.l.b16 %v374
  %v411 = vunpack.c.l.b16 %v375
  %v412 = vunpack.c.l.b16 %v376
  %v413 = vpack.c.b16 %v398, %v397
  %v414 = vpack.c.b16 %v400, %v399
  %v415 = vpack.c.b16 %v402, %v401
  %v416 = vpack.c.b16 %v404, %v403
  %v417 = vpack.c.b16 %v406, %v405
  %v418 = vpack.c.b16 %v408, %v407
  %v419 = vpack.c.b16 %v410, %v409
  %v420 = vpack.c.b16 %v412, %v411
  %429 = vmatpush.bf16.msra.mxu0 %v420
  %430 = vmatpush.bf16.msra.mxu0 %v419
  %431 = vmatpush.bf16.msra.mxu0 %v418
  %432 = vmatpush.bf16.msra.mxu0 %v417
  %433 = vmatpush.bf16.msra.mxu0 %v416
  %434 = vmatpush.bf16.msra.mxu0 %v415
  %435 = vmatpush.bf16.msra.mxu0 %v414
  %436 = vmatpush.bf16.msra.mxu0 %v413
  %437 = vmatmul.bf16.gmra.mxu0 %v345
  %v438 = vpop.f32.mrf.mxu0
  %v439 = vadd.f32 %v379, %v438
  %v440 = vpop.f32.mrf.mxu0
  %v441 = vadd.f32 %v379, %v440
  %442 = vmatmul.bf16.gmra.mxu0 %v346
  %v443 = vpop.f32.mrf.mxu0
  %v444 = vadd.f32 %v379, %v443
  %v445 = vpop.f32.mrf.mxu0
  %v446 = vadd.f32 %v379, %v445
  %447 = vmatmul.bf16.gmra.mxu0 %v347
  %v448 = vpop.f32.mrf.mxu0
  %v449 = vadd.f32 %v379, %v448
  %v450 = vpop.f32.mrf.mxu0
  %v451 = vadd.f32 %v379, %v450
  %452 = vmatmul.bf16.gmra.mxu0 %v348
  %v453 = vpop.f32.mrf.mxu0
  %v454 = vadd.f32 %v379, %v453
  %v455 = vpop.f32.mrf.mxu0
  %v456 = vadd.f32 %v379, %v455
  %457 = vmatmul.bf16.gmra.mxu0 %v349
  %v458 = vpop.f32.mrf.mxu0
  %v459 = vadd.f32 %v379, %v458
  %v460 = vpop.f32.mrf.mxu0
  %v461 = vadd.f32 %v379, %v460
  %462 = vmatmul.bf16.gmra.mxu0 %v350
  %v463 = vpop.f32.mrf.mxu0
  %v464 = vadd.f32 %v379, %v463
  %v465 = vpop.f32.mrf.mxu0
  %v466 = vadd.f32 %v379, %v465
  %467 = vmatmul.bf16.gmra.mxu0 %v351
  %v468 = vpop.f32.mrf.mxu0
  %v469 = vadd.f32 %v379, %v468
  %v470 = vpop.f32.mrf.mxu0
  %v471 = vadd.f32 %v379, %v470
  %472 = vmatmul.bf16.gmra.mxu0 %v352
  %v473 = vpop.f32.mrf.mxu0
  %v474 = vadd.f32 %v379, %v473
  %v475 = vpop.f32.mrf.mxu0
  %v476 = vadd.f32 %v379, %v475
  %477 = vmatmul.bf16.gmra.mxu0 %v353
  %v478 = vpop.f32.mrf.mxu0
  %v479 = vadd.f32 %v379, %v478
  %v480 = vpop.f32.mrf.mxu0
  %v481 = vadd.f32 %v379, %v480
  %482 = vmatmul.bf16.gmra.mxu0 %v354
  %v483 = vpop.f32.mrf.mxu0
  %v484 = vadd.f32 %v379, %v483
  %v485 = vpop.f32.mrf.mxu0
  %v486 = vadd.f32 %v379, %v485
  %487 = vmatmul.bf16.gmra.mxu0 %v355
  %v488 = vpop.f32.mrf.mxu0
  %v489 = vadd.f32 %v379, %v488
  %v490 = vpop.f32.mrf.mxu0
  %v491 = vadd.f32 %v379, %v490
  %492 = vmatmul.bf16.gmra.mxu0 %v356
  %v493 = vpop.f32.mrf.mxu0
  %v494 = vadd.f32 %v379, %v493
  %v495 = vpop.f32.mrf.mxu0
  %v496 = vadd.f32 %v379, %v495
  %497 = vmatmul.bf16.gmra.mxu0 %v357
  %v498 = vpop.f32.mrf.mxu0
  %v499 = vadd.f32 %v379, %v498
  %v500 = vpop.f32.mrf.mxu0
  %v501 = vadd.f32 %v379, %v500
  %502 = vmatmul.bf16.gmra.mxu0 %v358
  %v503 = vpop.f32.mrf.mxu0
  %v504 = vadd.f32 %v379, %v503
  %v505 = vpop.f32.mrf.mxu0
  %v506 = vadd.f32 %v379, %v505
  %507 = vmatmul.bf16.gmra.mxu0 %v359
  %v508 = vpop.f32.mrf.mxu0
  %v509 = vadd.f32 %v379, %v508
  %v510 = vpop.f32.mrf.mxu0
  %v511 = vadd.f32 %v379, %v510
  %512 = vmatmul.bf16.gmra.mxu0 %v360
  %v513 = vpop.f32.mrf.mxu0
  %v514 = vadd.f32 %v379, %v513
  %v515 = vpop.f32.mrf.mxu0
  %v516 = vadd.f32 %v379, %v515
  %517 = vdwg.mxu0
  %v518 = vmax.f32 %v439, 0.0
  %v519 = vmax.f32 %v441, 0.0
  %v520 = vmax.f32 %v444, 0.0
  %v521 = vmax.f32 %v446, 0.0
  %v522 = vmax.f32 %v449, 0.0
  %v523 = vmax.f32 %v451, 0.0
  %v524 = vmax.f32 %v454, 0.0
  %v525 = vmax.f32 %v456, 0.0
  %v526 = vmax.f32 %v459, 0.0
  %v527 = vmax.f32 %v461, 0.0
  %v528 = vmax.f32 %v464, 0.0
  %v529 = vmax.f32 %v466, 0.0
  %v530 = vmax.f32 %v469, 0.0
  %v531 = vmax.f32 %v471, 0.0
  %v532 = vmax.f32 %v474, 0.0
  %v533 = vmax.f32 %v476, 0.0
  %v534 = vmax.f32 %v479, 0.0
  %v535 = vmax.f32 %v481, 0.0
  %v536 = vmax.f32 %v484, 0.0
  %v537 = vmax.f32 %v486, 0.0
  %v538 = vmax.f32 %v489, 0.0
  %v539 = vmax.f32 %v491, 0.0
  %v540 = vmax.f32 %v494, 0.0
  %v541 = vmax.f32 %v496, 0.0
  %v542 = vmax.f32 %v499, 0.0
  %v543 = vmax.f32 %v501, 0.0
  %v544 = vmax.f32 %v504, 0.0
  %v545 = vmax.f32 %v506, 0.0
  %v546 = vmax.f32 %v509, 0.0
  %v547 = vmax.f32 %v511, 0.0
  %v548 = vmax.f32 %v514, 0.0
  %v549 = vmax.f32 %v516, 0.0
  %v550 = vpack.c.bf16 %v519, %v518
  %v551 = vpack.c.bf16 %v521, %v520
  %v552 = vpack.c.bf16 %v523, %v522
  %v553 = vpack.c.bf16 %v525, %v524
  %v554 = vpack.c.bf16 %v527, %v526
  %v555 = vpack.c.bf16 %v529, %v528
  %v556 = vpack.c.bf16 %v531, %v530
  %v557 = vpack.c.bf16 %v533, %v532
  %v558 = vpack.c.bf16 %v535, %v534
  %v559 = vpack.c.bf16 %v537, %v536
  %v560 = vpack.c.bf16 %v539, %v538
  %v561 = vpack.c.bf16 %v541, %v540
  %v562 = vpack.c.bf16 %v543, %v542
  %v563 = vpack.c.bf16 %v545, %v544
  %v564 = vpack.c.bf16 %v547, %v546
  %v565 = vpack.c.bf16 %v549, %v548
  %v566 = vld [vmem:[%s5] sm:$0xf]
  %v567 = vld [vmem:[%s5 + $0x4] sm:$0xf]
  %v568 = vld [vmem:[%s5 + $0x8] sm:$0xf]
  %v569 = vld [vmem:[%s5 + $0xc] sm:$0xf]
  %v570 = vld [vmem:[%s5 + $0x10] sm:$0xf]
  %v571 = vld [vmem:[%s5 + $0x14] sm:$0xf]
  %v572 = vld [vmem:[%s5 + $0x18] sm:$0xf]
  %v573 = vld [vmem:[%s5 + $0x1c] sm:$0xf]
  %v574 = vld [vmem:[%s5 + $0x20] sm:$0xf]
  %v575 = vld [vmem:[%s5 + $0x24] sm:$0xf]
  %v576 = vld [vmem:[%s5 + $0x28] sm:$0xf]
  %v577 = vld [vmem:[%s5 + $0x2c] sm:$0xf]
  %v578 = vld [vmem:[%s5 + $0x30] sm:$0xf]
  %v579 = vld [vmem:[%s5 + $0x34] sm:$0xf]
  %v580 = vld [vmem:[%s5 + $0x38] sm:$0xf]
  %v581 = vld [vmem:[%s5 + $0x3c] sm:$0xf]
  %v582 = vld [vmem:[%s6] sm:$0x1]
  %v584 = vperm.slane %v582, 0
  %v602 = vunpack.c.l.b16 %v566
  %v603 = vunpack.c.l.b16 %v567
  %v604 = vunpack.c.l.b16 %v568
  %v605 = vunpack.c.l.b16 %v569
  %v606 = vunpack.c.l.b16 %v570
  %v607 = vunpack.c.l.b16 %v571
  %v608 = vunpack.c.l.b16 %v572
  %v609 = vunpack.c.l.b16 %v573
  %v610 = vunpack.c.l.b16 %v574
  %v611 = vunpack.c.l.b16 %v575
  %v612 = vunpack.c.l.b16 %v576
  %v613 = vunpack.c.l.b16 %v577
  %v614 = vunpack.c.l.b16 %v578
  %v615 = vunpack.c.l.b16 %v579
  %v616 = vunpack.c.l.b16 %v580
  %v617 = vunpack.c.l.b16 %v581
  %v618 = vpack.c.b16 %v603, %v602
  %v619 = vpack.c.b16 %v605, %v604
  %v620 = vpack.c.b16 %v607, %v606
  %v621 = vpack.c.b16 %v609, %v608
  %v622 = vpack.c.b16 %v611, %v610
  %v623 = vpack.c.b16 %v613, %v612
  %v624 = vpack.c.b16 %v615, %v614
  %v625 = vpack.c.b16 %v617, %v616
  %634 = vmatpush.bf16.msra.mxu0 %v625
  %635 = vmatpush.bf16.msra.mxu0 %v624
  %636 = vmatpush.bf16.msra.mxu0 %v623
  %637 = vmatpush.bf16.msra.mxu0 %v622
  %638 = vmatpush.bf16.msra.mxu0 %v621
  %639 = vmatpush.bf16.msra.mxu0 %v620
  %640 = vmatpush.bf16.msra.mxu0 %v619
  %641 = vmatpush.bf16.msra.mxu0 %v618
  %642 = vmatmul.bf16.gmra.mxu0 %v550
  %v643 = vpop.f32.mrf.mxu0
  %v644 = vadd.f32 %v584, %v643
  %v645 = vpop.f32.mrf.mxu0
  %v646 = vadd.f32 %v584, %v645
  %647 = vmatmul.bf16.gmra.mxu0 %v551
  %v648 = vpop.f32.mrf.mxu0
  %v649 = vadd.f32 %v584, %v648
  %v650 = vpop.f32.mrf.mxu0
  %v651 = vadd.f32 %v584, %v650
  %652 = vmatmul.bf16.gmra.mxu0 %v552
  %v653 = vpop.f32.mrf.mxu0
  %v654 = vadd.f32 %v584, %v653
  %v655 = vpop.f32.mrf.mxu0
  %v656 = vadd.f32 %v584, %v655
  %657 = vmatmul.bf16.gmra.mxu0 %v553
  %v658 = vpop.f32.mrf.mxu0
  %v659 = vadd.f32 %v584, %v658
  %v660 = vpop.f32.mrf.mxu0
  %v661 = vadd.f32 %v584, %v660
  %662 = vmatmul.bf16.gmra.mxu0 %v554
  %v663 = vpop.f32.mrf.mxu0
  %v664 = vadd.f32 %v584, %v663
  %v665 = vpop.f32.mrf.mxu0
  %v666 = vadd.f32 %v584, %v665
  %667 = vmatmul.bf16.gmra.mxu0 %v555
  %v668 = vpop.f32.mrf.mxu0
  %v669 = vadd.f32 %v584, %v668
  %v670 = vpop.f32.mrf.mxu0
  %v671 = vadd.f32 %v584, %v670
  %672 = vmatmul.bf16.gmra.mxu0 %v556
  %v673 = vpop.f32.mrf.mxu0
  %v674 = vadd.f32 %v584, %v673
  %v675 = vpop.f32.mrf.mxu0
  %v676 = vadd.f32 %v584, %v675
  %677 = vmatmul.bf16.gmra.mxu0 %v557
  %v678 = vpop.f32.mrf.mxu0
  %v679 = vadd.f32 %v584, %v678
  %v680 = vpop.f32.mrf.mxu0
  %v681 = vadd.f32 %v584, %v680
  %682 = vmatmul.bf16.gmra.mxu0 %v558
  %v683 = vpop.f32.mrf.mxu0
  %v684 = vadd.f32 %v584, %v683
  %v685 = vpop.f32.mrf.mxu0
  %v686 = vadd.f32 %v584, %v685
  %687 = vmatmul.bf16.gmra.mxu0 %v559
  %v688 = vpop.f32.mrf.mxu0
  %v689 = vadd.f32 %v584, %v688
  %v690 = vpop.f32.mrf.mxu0
  %v691 = vadd.f32 %v584, %v690
  %692 = vmatmul.bf16.gmra.mxu0 %v560
  %v693 = vpop.f32.mrf.mxu0
  %v694 = vadd.f32 %v584, %v693
  %v695 = vpop.f32.mrf.mxu0
  %v696 = vadd.f32 %v584, %v695
  %697 = vmatmul.bf16.gmra.mxu0 %v561
  %v698 = vpop.f32.mrf.mxu0
  %v699 = vadd.f32 %v584, %v698
  %v700 = vpop.f32.mrf.mxu0
  %v701 = vadd.f32 %v584, %v700
  %702 = vmatmul.bf16.gmra.mxu0 %v562
  %v703 = vpop.f32.mrf.mxu0
  %v704 = vadd.f32 %v584, %v703
  %v705 = vpop.f32.mrf.mxu0
  %v706 = vadd.f32 %v584, %v705
  %707 = vmatmul.bf16.gmra.mxu0 %v563
  %v708 = vpop.f32.mrf.mxu0
  %v709 = vadd.f32 %v584, %v708
  %v710 = vpop.f32.mrf.mxu0
  %v711 = vadd.f32 %v584, %v710
  %712 = vmatmul.bf16.gmra.mxu0 %v564
  %v713 = vpop.f32.mrf.mxu0
  %v714 = vadd.f32 %v584, %v713
  %v715 = vpop.f32.mrf.mxu0
  %v716 = vadd.f32 %v584, %v715
  %717 = vmatmul.bf16.gmra.mxu0 %v565
  %v718 = vpop.f32.mrf.mxu0
  %v719 = vadd.f32 %v584, %v718
  %v720 = vpop.f32.mrf.mxu0
  %v721 = vadd.f32 %v584, %v720
  %722 = vdwg.mxu0
  %vm723 = vcmask 64512
  %724 = vst.msk [vmem:[%s7] sm:$0xff] %vm723, %v644
  %725 = vst.msk [vmem:[%s7 + $0x8] sm:$0xff] %vm723, %v646
  %726 = vst.msk [vmem:[%s7 + $0x10] sm:$0xff] %vm723, %v649
  %727 = vst.msk [vmem:[%s7 + $0x18] sm:$0xff] %vm723, %v651
  %728 = vst.msk [vmem:[%s7 + $0x20] sm:$0xff] %vm723, %v654
  %729 = vst.msk [vmem:[%s7 + $0x28] sm:$0xff] %vm723, %v656
  %730 = vst.msk [vmem:[%s7 + $0x30] sm:$0xff] %vm723, %v659
  %731 = vst.msk [vmem:[%s7 + $0x38] sm:$0xff] %vm723, %v661
  %732 = vst.msk [vmem:[%s7 + $0x40] sm:$0xff] %vm723, %v664
  %733 = vst.msk [vmem:[%s7 + $0x48] sm:$0xff] %vm723, %v666
  %734 = vst.msk [vmem:[%s7 + $0x50] sm:$0xff] %vm723, %v669
  %735 = vst.msk [vmem:[%s7 + $0x58] sm:$0xff] %vm723, %v671
  %736 = vst.msk [vmem:[%s7 + $0x60] sm:$0xff] %vm723, %v674
  %737 = vst.msk [vmem:[%s7 + $0x68] sm:$0xff] %vm723, %v676
  %738 = vst.msk [vmem:[%s7 + $0x70] sm:$0xff] %vm723, %v679
  %739 = vst.msk [vmem:[%s7 + $0x78] sm:$0xff] %vm723, %v681
  %740 = vst.msk [vmem:[%s7 + $0x80] sm:$0xff] %vm723, %v684
  %741 = vst.msk [vmem:[%s7 + $0x88] sm:$0xff] %vm723, %v686
  %742 = vst.msk [vmem:[%s7 + $0x90] sm:$0xff] %vm723, %v689
  %743 = vst.msk [vmem:[%s7 + $0x98] sm:$0xff] %vm723, %v691
  %744 = vst.msk [vmem:[%s7 + $0xa0] sm:$0xff] %vm723, %v694
  %745 = vst.msk [vmem:[%s7 + $0xa8] sm:$0xff] %vm723, %v696
  %746 = vst.msk [vmem:[%s7 + $0xb0] sm:$0xff] %vm723, %v699
  %747 = vst.msk [vmem:[%s7 + $0xb8] sm:$0xff] %vm723, %v701
  %748 = vst.msk [vmem:[%s7 + $0xc0] sm:$0xff] %vm723, %v704
  %749 = vst.msk [vmem:[%s7 + $0xc8] sm:$0xff] %vm723, %v706
  %750 = vst.msk [vmem:[%s7 + $0xd0] sm:$0xff] %vm723, %v709
  %751 = vst.msk [vmem:[%s7 + $0xd8] sm:$0xff] %vm723, %v711
  %752 = vst.msk [vmem:[%s7 + $0xe0] sm:$0xff] %vm723, %v714
  %753 = vst.msk [vmem:[%s7 + $0xe8] sm:$0xff] %vm723, %v716
  %754 = vst.msk [vmem:[%s7 + $0xf0] sm:$0xff] %vm723, %v719
  %755 = vst.msk [vmem:[%s7 + $0xf8] sm:$0xff] %vm723, %v721
  // Predicated region
  $region30: #{tpu_custom_call.1} parent=0 // pred_check
    _
  $region31: #{tpu_custom_call.1} parent=0 // pred_check_branch
    %757 = sbr.rel (0) target = $region33
  $region32: #{tpu_custom_call.1} parent=0 // pred_region
    _
  $region33: #{tpu_custom_call.1} parent=0 // pred_fallthru
    _
  // Predicated region
  $region34: #{tpu_custom_call.1} parent=0 // pred_check
    _
  $region35: #{tpu_custom_call.1} parent=0 // pred_check_branch
    %759 = sbr.rel (0) target = $region37
  $region36: #{tpu_custom_call.1} parent=0 // pred_region
    _
  $region37: #{tpu_custom_call.1} parent=0 // pred_fallthru
    _

</llo_original>
